<compile_context>
chip_gen: v6e
topology: v6e:2x2x1
jax: 0.10.0
libtpu: 0.0.40
codegen_flags: <defaults>
</compile_context>

<pallas_src>
import jax
import jax.numpy as jnp
from jax.experimental import pallas as pl
from jax.experimental.pallas import tpu as pltpu

_LANES = 128


def _round_up(x: int, m: int) -> int:
    return ((x + m - 1) // m) * m


def policy_net_kernel(xT_ref, w1_ref, b1_ref, w2_ref, b2_ref, outT_ref):
    # xT: (S, TB)   w1: (H, S)   b1: (H, 1)   w2: (A, H)   b2: (A, 1)
    xT = xT_ref[...]

    # fc1 + ReLU  (f32 accumulate on the MXU) -> (H, TB), lane-dense.
    h = jnp.dot(w1_ref[...], xT, preferred_element_type=jnp.float32) + b1_ref[...]
    h = jnp.maximum(h, 0.0)

    # fc2 -> (A, TB)
    logits = jnp.dot(w2_ref[...], h, preferred_element_type=jnp.float32) + b2_ref[...]

    # Numerically stable softmax over the action axis (axis 0: A sublanes).
    m = jnp.max(logits, axis=0, keepdims=True)          # (1, TB)
    e = jnp.exp(logits - m)                              # (A, TB)
    denom = jnp.sum(e, axis=0, keepdims=True)            # (1, TB)
    outT_ref[...] = (e / denom).astype(outT_ref.dtype)


def policy_net(x, w1, b1, w2, b2, *, max_batch_tile=1024):
    """x: (B, S). w1: (H, S), b1: (H,), w2: (A, H), b2: (A,) (PyTorch layout)."""
    B, S = x.shape
    H = w1.shape[0]
    A = w2.shape[0]

    # Balanced, lane-aligned batch tiles; single tile for small/medium batches.
    n_tiles = pl.cdiv(B, max_batch_tile)
    if n_tiles > 1:
        n_tiles = _round_up(n_tiles, 2)  # even split across v7x's two TCs
    TB = _round_up(pl.cdiv(B, n_tiles), _LANES)
    B_pad = n_tiles * TB

    # Transpose to batch-on-lanes and zero-pad the batch (padded columns flow
    # through ReLU/softmax harmlessly and are sliced off below).
    xT = x.T
    if B_pad != B:
        xT = jnp.pad(xT, ((0, 0), (0, B_pad - B)))

    vmem = pltpu.MemorySpace.VMEM
    cost = pl.CostEstimate(
        flops=2 * B_pad * (S * H + H * A),
        transcendentals=B_pad * A,
        bytes_accessed=4 * (B_pad * S + B_pad * A + S * H + H + H * A + A),
    )

    outT = pl.pallas_call(
        policy_net_kernel,
        out_shape=jax.ShapeDtypeStruct((A, B_pad), jnp.float32),
        grid=(n_tiles,),
        in_specs=[
            # xT: tiled over batch (lane axis)
            pl.BlockSpec((S, TB), lambda i: (0, i), memory_space=vmem),
            # weights / biases: constant block index -> resident in VMEM
            pl.BlockSpec((H, S), lambda i: (0, 0), memory_space=vmem),
            pl.BlockSpec((H, 1), lambda i: (0, 0), memory_space=vmem),
            pl.BlockSpec((A, H), lambda i: (0, 0), memory_space=vmem),
            pl.BlockSpec((A, 1), lambda i: (0, 0), memory_space=vmem),
        ],
        out_specs=pl.BlockSpec((A, TB), lambda i: (0, i), memory_space=vmem),
        compiler_params=pltpu.CompilerParams(
            dimension_semantics=("parallel",),
        ),
        cost_estimate=cost,
    )(xT, w1, b1.reshape(H, 1), w2, b2.reshape(A, 1))

    # Back to (B, A) row-major, dropping batch padding.
    return outT.T[:B]


def init_linear(key, fan_in, fan_out):
    # PyTorch nn.Linear default init: uniform(-1/sqrt(fan_in), +1/sqrt(fan_in)),
    # weight stored as (fan_out, fan_in).
    kw, kb = jax.random.split(key)
    bound = 1.0 / jnp.sqrt(float(fan_in))
    w = jax.random.uniform(kw, (fan_out, fan_in), jnp.float32, -bound, bound)
    b = jax.random.uniform(kb, (fan_out,), jnp.float32, -bound, bound)
    return w, b


def _reference(x, w1, b1, w2, b2):
    h = jnp.maximum(x @ w1.T + b1, 0.0)
    return jax.nn.softmax(h @ w2.T + b2, axis=1)


if __name__ == "__main__":
    key = jax.random.PRNGKey(0)
    k_x, k_fc1, k_fc2, k_big = jax.random.split(key, 4)

    batch, state_dim, hidden, action_dim = 2, 8, 64, 4

    x = jax.random.normal(k_x, (batch, state_dim), jnp.float32)
    w1, b1 = init_linear(k_fc1, state_dim, hidden)
    w2, b2 = init_linear(k_fc2, hidden, action_dim)

    out = jax.block_until_ready(policy_net(x, w1, b1, w2, b2))
    ref = _reference(x, w1, b1, w2, b2)
    assert out.shape == (batch, action_dim)
    assert jnp.allclose(out, ref, atol=1e-5, rtol=1e-5)
    assert jnp.allclose(jnp.sum(out, axis=1), 1.0, atol=1e-5)

    # Secondary check: larger batch (padding to one lane-aligned tile).
    big_batch = 300
    xb = jax.random.normal(k_big, (big_batch, state_dim), jnp.float32)
    out_b = jax.block_until_ready(policy_net(xb, w1, b1, w2, b2))
    ref_b = _reference(xb, w1, b1, w2, b2)
    assert out_b.shape == (big_batch, action_dim)
    assert jnp.allclose(out_b, ref_b, atol=1e-5, rtol=1e-5)

    # Tertiary check: batch large enough to exercise a multi-tile (even) grid.
    huge_batch = 3000
    xh = jax.random.normal(k_big, (huge_batch, state_dim), jnp.float32)
    out_h = jax.block_until_ready(policy_net(xh, w1, b1, w2, b2))
    ref_h = _reference(xh, w1, b1, w2, b2)
    assert out_h.shape == (huge_batch, action_dim)
    assert jnp.allclose(out_h, ref_h, atol=1e-5, rtol=1e-5)

    print("KERNEL_OK")
</pallas_src>

<mosaic_0001>
module attributes {stable_mosaic.version = 11 : i64} {
  func.func @policy_net_kernel(%arg0: i32, %arg1: memref<8x128xf32, #tpu.memory_space<vmem>>, %arg2: memref<64x8xf32, #tpu.memory_space<vmem>>, %arg3: memref<64x1xf32, #tpu.memory_space<vmem>>, %arg4: memref<4x64xf32, #tpu.memory_space<vmem>>, %arg5: memref<4x1xf32, #tpu.memory_space<vmem>>, %arg6: memref<4x128xf32, #tpu.memory_space<vmem>>) attributes {dimension_semantics = [#tpu.dimension_semantics<parallel>], iteration_bounds = array<i64: 1>, scalar_prefetch = 0 : i64, scratch_operands = 0 : i64, tpu.core_type = #tpu.core_type<tc>, window_params = [{transform_indices = @transform_0, window_bounds = array<i64: 8, 128>}, {pipeline_mode = #tpu.pipeline_mode<synchronous>, transform_indices = @transform_1, window_bounds = array<i64: 64, 8>}, {pipeline_mode = #tpu.pipeline_mode<synchronous>, transform_indices = @transform_2, window_bounds = array<i64: 64, 1>}, {pipeline_mode = #tpu.pipeline_mode<synchronous>, transform_indices = @transform_3, window_bounds = array<i64: 4, 64>}, {pipeline_mode = #tpu.pipeline_mode<synchronous>, transform_indices = @transform_4, window_bounds = array<i64: 4, 1>}, {transform_indices = @transform_5, window_bounds = array<i64: 4, 128>}]} {
    %c0 = arith.constant 0 : index
    %c0_0 = arith.constant 0 : index
    %0 = vector.load %arg1[%c0, %c0_0] : memref<8x128xf32, #tpu.memory_space<vmem>>, vector<8x128xf32>
    %c0_1 = arith.constant 0 : index
    %c0_2 = arith.constant 0 : index
    %1 = vector.load %arg2[%c0_1, %c0_2] : memref<64x8xf32, #tpu.memory_space<vmem>>, vector<64x8xf32>
    %cst = arith.constant dense<0.000000e+00> : vector<64x128xf32>
    %2 = tpu.matmul %1, %0, %cst {dimension_numbers = #tpu.dot_dimension_numbers<[1], [0], [0], [1], [0, 0, 1, 1], [], []>} : vector<64x8xf32>, vector<8x128xf32>, vector<64x128xf32> -> vector<64x128xf32>
    %c0_3 = arith.constant 0 : index
    %c0_4 = arith.constant 0 : index
    %3 = vector.load %arg3[%c0_3, %c0_4] : memref<64x1xf32, #tpu.memory_space<vmem>>, vector<64x1xf32>
    %4 = vector.broadcast %3 : vector<64x1xf32> to vector<64x128xf32>
    %5 = arith.addf %2, %4 : vector<64x128xf32>
    %cst_5 = arith.constant 0.000000e+00 : f32
    %6 = vector.broadcast %cst_5 : f32 to vector<64x128xf32>
    %7 = arith.maximumf %5, %6 : vector<64x128xf32>
    %c0_6 = arith.constant 0 : index
    %c0_7 = arith.constant 0 : index
    %8 = vector.load %arg4[%c0_6, %c0_7] : memref<4x64xf32, #tpu.memory_space<vmem>>, vector<4x64xf32>
    %cst_8 = arith.constant dense<0.000000e+00> : vector<4x128xf32>
    %9 = tpu.matmul %8, %7, %cst_8 {dimension_numbers = #tpu.dot_dimension_numbers<[1], [0], [0], [1], [0, 0, 1, 1], [], []>} : vector<4x64xf32>, vector<64x128xf32>, vector<4x128xf32> -> vector<4x128xf32>
    %c0_9 = arith.constant 0 : index
    %c0_10 = arith.constant 0 : index
    %10 = vector.load %arg5[%c0_9, %c0_10] : memref<4x1xf32, #tpu.memory_space<vmem>>, vector<4x1xf32>
    %11 = vector.broadcast %10 : vector<4x1xf32> to vector<4x128xf32>
    %12 = arith.addf %9, %11 : vector<4x128xf32>
    %cst_11 = arith.constant dense<0xFF800000> : vector<128xf32>
    %13 = vector.multi_reduction <maximumf>, %12, %cst_11 [0] : vector<4x128xf32> to vector<128xf32>
    %14 = vector.shape_cast %13 : vector<128xf32> to vector<1x128xf32>
    %15 = vector.broadcast %14 : vector<1x128xf32> to vector<4x128xf32>
    %16 = arith.subf %12, %15 : vector<4x128xf32>
    %17 = math.exp %16 : vector<4x128xf32>
    %cst_12 = arith.constant dense<0.000000e+00> : vector<128xf32>
    %18 = vector.multi_reduction <add>, %17, %cst_12 [0] : vector<4x128xf32> to vector<128xf32>
    %19 = vector.shape_cast %18 : vector<128xf32> to vector<1x128xf32>
    %20 = vector.broadcast %19 : vector<1x128xf32> to vector<4x128xf32>
    %21 = arith.divf %17, %20 : vector<4x128xf32>
    %c0_13 = arith.constant 0 : index
    %c0_14 = arith.constant 0 : index
    %22 = vector.load %arg6[%c0_13, %c0_14] : memref<4x128xf32, #tpu.memory_space<vmem>>, vector<4x128xf32>
    tpu.vector_store %arg6[%c0_13, %c0_14], %21 {strides = array<i32>} : memref<4x128xf32, #tpu.memory_space<vmem>>, vector<4x128xf32>,
    return
  }
  func.func @transform_0(%arg0: i32) -> (i32, i32) {
    %c0_i32 = arith.constant 0 : i32
    %c0_i32_0 = arith.constant 0 : i32
    return %c0_i32, %arg0 : i32, i32
  }
  func.func @transform_1(%arg0: i32) -> (i32, i32) {
    %c0_i32 = arith.constant 0 : i32
    %c0_i32_0 = arith.constant 0 : i32
    %c0_i32_1 = arith.constant 0 : i32
    return %c0_i32, %c0_i32_0 : i32, i32
  }
  func.func @transform_2(%arg0: i32) -> (i32, i32) {
    %c0_i32 = arith.constant 0 : i32
    %c0_i32_0 = arith.constant 0 : i32
    %c0_i32_1 = arith.constant 0 : i32
    return %c0_i32, %c0_i32_0 : i32, i32
  }
  func.func @transform_3(%arg0: i32) -> (i32, i32) {
    %c0_i32 = arith.constant 0 : i32
    %c0_i32_0 = arith.constant 0 : i32
    %c0_i32_1 = arith.constant 0 : i32
    return %c0_i32, %c0_i32_0 : i32, i32
  }
  func.func @transform_4(%arg0: i32) -> (i32, i32) {
    %c0_i32 = arith.constant 0 : i32
    %c0_i32_0 = arith.constant 0 : i32
    %c0_i32_1 = arith.constant 0 : i32
    return %c0_i32, %c0_i32_0 : i32, i32
  }
  func.func @transform_5(%arg0: i32) -> (i32, i32) {
    %c0_i32 = arith.constant 0 : i32
    %c0_i32_0 = arith.constant 0 : i32
    return %c0_i32, %arg0 : i32, i32
  }
}

</mosaic_0001>

<llo_original>
// kernel: tpu_custom_call.1
$region0: #{tpu_custom_call.1}
  #allocation0 [shape = 'u32[]', space=smem, size = 0x4, offset = 0x4, fixed_abs, tag = 'smem constant byte address 0x4 - core index']
  #allocation1 [shape = 'u32[144,128]{1,0:T(1,128)}', space=vmem, size = 0x12000, scoped, tag = 'internal scratch']
  %s0 = inlined_call_operand.vmem [shape: f32[8,128], index: 0, kind: input, shape index: {}]
  %s1 = inlined_call_operand.vmem [shape: f32[64,8], index: 1, kind: input, shape index: {}]
  %s2 = inlined_call_operand.vmem [shape: f32[64,1], index: 2, kind: input, shape index: {}]
  %s3 = inlined_call_operand.vmem [shape: f32[4,64], index: 3, kind: input, shape index: {}]
  %s4 = inlined_call_operand.vmem [shape: f32[4,1], index: 4, kind: input, shape index: {}]
  %s5 = inlined_call_operand.hbm [shape: f32[4,128], index: 5, kind: output, shape index: {}]
  %s6 = sld [smem:[#allocation0]]
  $region30: #{tpu_custom_call.1} parent=0
    _
  %s8 = ssub.s32 1, %s6
  %s9 = scalar_select 0, %s8, %s6
  $region1: #{tpu_custom_call.1} parent=0
    #allocation2 [shape = 'u8[2048]{0}', space=vmem, size = 0x800, scoped, tag = 'output window, operand 0, single buffered']
    #allocation3 [shape = 's32[1]{0}', space=sflag, size = 0x4, scoped, tag = 'scoped memory for tpu_custom_call.1']
    %10 = vsyncpa [#allocation3], 0
    // Predicated region
    $region2: #{tpu_custom_call.1} parent=1 // pred_check
      _
    $region3: #{tpu_custom_call.1} parent=1 // pred_check_branch
      %12 = sbr.rel (0) target = $region5
    $region4: #{tpu_custom_call.1} parent=1 // pred_region
      _
    $region5: #{tpu_custom_call.1} parent=1 // pred_fallthru
      _
    // Predicated region
    $region6: #{tpu_custom_call.1} parent=1 // pred_check
      _
    $region7: #{tpu_custom_call.1} parent=1 // pred_check_branch
      %14 = sbr.rel (0) target = $region9
    $region8: #{tpu_custom_call.1} parent=1 // pred_region
      _
    $region9: #{tpu_custom_call.1} parent=1 // pred_fallthru
      _
    // Predicated region
    $region10: #{tpu_custom_call.1} parent=1 // pred_check
      _
    $region11: #{tpu_custom_call.1} parent=1 // pred_check_branch
      %16 = sbr.rel (0) target = $region13
    $region12: #{tpu_custom_call.1} parent=1 // pred_region
      _
    $region13: #{tpu_custom_call.1} parent=1 // pred_fallthru
      _
    // Predicated region
    $region14: #{tpu_custom_call.1} parent=1 // pred_check
      _
    $region15: #{tpu_custom_call.1} parent=1 // pred_check_branch
      %18 = sbr.rel (0) target = $region17
    $region16: #{tpu_custom_call.1} parent=1 // pred_region
      _
    $region17: #{tpu_custom_call.1} parent=1 // pred_fallthru
      _
    // Predicated region
    $region18: #{tpu_custom_call.1} parent=1 // pred_check
      _
    $region19: #{tpu_custom_call.1} parent=1 // pred_check_branch
      %20 = sbr.rel (0) target = $region21
    $region20: #{tpu_custom_call.1} parent=1 // pred_region
      _
    $region21: #{tpu_custom_call.1} parent=1 // pred_fallthru
      _
    %v21 = vld [vmem:[%s0] sm:$0xff]
    %v22 = vld [vmem:[%s1] sm:$0xff]
    %v23 = vld [vmem:[%s1 + $0x8] sm:$0xff]
    %v24 = vld [vmem:[%s1 + $0x10] sm:$0xff]
    %v25 = vld [vmem:[%s1 + $0x18] sm:$0xff]
    %v26 = vld [vmem:[%s1 + $0x20] sm:$0xff]
    %v27 = vld [vmem:[%s1 + $0x28] sm:$0xff]
    %v28 = vld [vmem:[%s1 + $0x30] sm:$0xff]
    %v29 = vld [vmem:[%s1 + $0x38] sm:$0xff]
    %v30 = vld [vmem:[%s2] sm:$0xff]
    %v31 = vld [vmem:[%s2 + $0x8] sm:$0xff]
    %v32 = vld [vmem:[%s2 + $0x10] sm:$0xff]
    %v33 = vld [vmem:[%s2 + $0x18] sm:$0xff]
    %v34 = vld [vmem:[%s2 + $0x20] sm:$0xff]
    %v35 = vld [vmem:[%s2 + $0x28] sm:$0xff]
    %v36 = vld [vmem:[%s2 + $0x30] sm:$0xff]
    %v37 = vld [vmem:[%s2 + $0x38] sm:$0xff]
    %39 = vset.pattern.permute.xlu0 0
    %40 = vperm.xlu0 %39, %v30
    %v41 = vpop.permute.xlu0 %40
    %44 = vset.pattern.permute.xlu0 0
    %45 = vperm.xlu0 %44, %v31
    %v46 = vpop.permute.xlu0 %45
    %49 = vset.pattern.permute.xlu0 0
    %50 = vperm.xlu0 %49, %v32
    %v51 = vpop.permute.xlu0 %50
    %54 = vset.pattern.permute.xlu0 0
    %55 = vperm.xlu0 %54, %v33
    %v56 = vpop.permute.xlu0 %55
    %59 = vset.pattern.permute.xlu0 0
    %60 = vperm.xlu0 %59, %v34
    %v61 = vpop.permute.xlu0 %60
    %64 = vset.pattern.permute.xlu0 0
    %65 = vperm.xlu0 %64, %v35
    %v66 = vpop.permute.xlu0 %65
    %69 = vset.pattern.permute.xlu0 0
    %70 = vperm.xlu0 %69, %v36
    %v71 = vpop.permute.xlu0 %70
    %74 = vset.pattern.permute.xlu0 0
    %75 = vperm.xlu0 %74, %v37
    %v76 = vpop.permute.xlu0 %75
    %vm78 = vcmask 64512
    %v80 = vsel %vm78, %v22, 0
    %v83 = vsel %vm78, %v23, 0
    %v86 = vsel %vm78, %v24, 0
    %v89 = vsel %vm78, %v25, 0
    %v92 = vsel %vm78, %v26, 0
    %v95 = vsel %vm78, %v27, 0
    %v98 = vsel %vm78, %v28, 0
    %v101 = vsel %vm78, %v29, 0
    %103 = vmatprep.subr.mxu0 0.0
    %104 = vmatpush1.msra.mxu0 0.0
    %105 = vmatprep.subr.mxu0 0.0
    %106 = vmatpush1.msra.mxu0 0.0
    %107 = vmatprep.subr.mxu0 0.0
    %108 = vmatpush1.msra.mxu0 0.0
    %109 = vmatprep.subr.mxu0 0.0
    %110 = vmatpush1.msra.mxu0 0.0
    %111 = vmatprep.subr.mxu0 0.0
    %112 = vmatpush1.msra.mxu0 0.0
    %113 = vmatprep.subr.mxu0 0.0
    %114 = vmatpush1.msra.mxu0 0.0
    %115 = vmatprep.subr.mxu0 0.0
    %116 = vmatpush1.msra.mxu0 0.0
    %117 = vmatprep.subr.mxu0 0.0
    %118 = vmatpush1.msra.mxu0 0.0
    %119 = vmatprep.subr.mxu0 0.0
    %120 = vmatpush1.msra.mxu0 0.0
    %121 = vmatprep.subr.mxu0 0.0
    %122 = vmatpush1.msra.mxu0 0.0
    %123 = vmatprep.subr.mxu0 0.0
    %124 = vmatpush1.msra.mxu0 0.0
    %125 = vmatprep.subr.mxu0 0.0
    %126 = vmatpush1.msra.mxu0 0.0
    %127 = vmatprep.subr.mxu0 0.0
    %128 = vmatpush1.msra.mxu0 0.0
    %129 = vmatprep.subr.mxu0 0.0
    %130 = vmatpush1.msra.mxu0 0.0
    %131 = vmatprep.subr.mxu0 0.0
    %132 = vmatpush1.msra.mxu0 0.0
    %133 = vmatprep.subr.mxu0 0.0
    %134 = vmatpush1.msra.mxu0 %v21
    %135 = vmatprep.subr.mxu0 0.0
    %136 = vmatpush2.msra.mxu0 0.0
    %137 = vmatprep.subr.mxu0 0.0
    %138 = vmatpush2.msra.mxu0 0.0
    %139 = vmatprep.subr.mxu0 0.0
    %140 = vmatpush2.msra.mxu0 0.0
    %141 = vmatprep.subr.mxu0 0.0
    %142 = vmatpush2.msra.mxu0 0.0
    %143 = vmatprep.subr.mxu0 0.0
    %144 = vmatpush2.msra.mxu0 0.0
    %145 = vmatprep.subr.mxu0 0.0
    %146 = vmatpush2.msra.mxu0 0.0
    %147 = vmatprep.subr.mxu0 0.0
    %148 = vmatpush2.msra.mxu0 0.0
    %149 = vmatprep.subr.mxu0 0.0
    %150 = vmatpush2.msra.mxu0 0.0
    %151 = vmatprep.subr.mxu0 0.0
    %152 = vmatpush2.msra.mxu0 0.0
    %153 = vmatprep.subr.mxu0 0.0
    %154 = vmatpush2.msra.mxu0 0.0
    %155 = vmatprep.subr.mxu0 0.0
    %156 = vmatpush2.msra.mxu0 0.0
    %157 = vmatprep.subr.mxu0 0.0
    %158 = vmatpush2.msra.mxu0 0.0
    %159 = vmatprep.subr.mxu0 0.0
    %160 = vmatpush2.msra.mxu0 0.0
    %161 = vmatprep.subr.mxu0 0.0
    %162 = vmatpush2.msra.mxu0 0.0
    %163 = vmatprep.subr.mxu0 0.0
    %164 = vmatpush2.msra.mxu0 0.0
    %165 = vmatprep.subr.mxu0 0.0
    %166 = vmatpush2.msra.mxu0 0.0
    %167 = vmatprep.mubr.f32.mxu0 0.0
    %168 = vmatmul.mubr.f32.gmra.mxu0 %v80
    %v169 = vpop.f32.mrf.mxu0
    %v170 = vadd.f32 %v41, %v169
    %v171 = vpop.f32.mrf.mxu0
    %172 = vmatprep.mubr.f32.mxu0 0.0
    %173 = vmatmul.mubr.f32.gmra.mxu0 %v83
    %v174 = vpop.f32.mrf.mxu0
    %v175 = vadd.f32 %v46, %v174
    %v176 = vpop.f32.mrf.mxu0
    %177 = vmatprep.mubr.f32.mxu0 0.0
    %178 = vmatmul.mubr.f32.gmra.mxu0 %v86
    %v179 = vpop.f32.mrf.mxu0
    %v180 = vadd.f32 %v51, %v179
    %v181 = vpop.f32.mrf.mxu0
    %182 = vmatprep.mubr.f32.mxu0 0.0
    %183 = vmatmul.mubr.f32.gmra.mxu0 %v89
    %v184 = vpop.f32.mrf.mxu0
    %v185 = vadd.f32 %v56, %v184
    %v186 = vpop.f32.mrf.mxu0
    %187 = vmatprep.mubr.f32.mxu0 0.0
    %188 = vmatmul.mubr.f32.gmra.mxu0 %v92
    %v189 = vpop.f32.mrf.mxu0
    %v190 = vadd.f32 %v61, %v189
    %v191 = vpop.f32.mrf.mxu0
    %192 = vmatprep.mubr.f32.mxu0 0.0
    %193 = vmatmul.mubr.f32.gmra.mxu0 %v95
    %v194 = vpop.f32.mrf.mxu0
    %v195 = vadd.f32 %v66, %v194
    %v196 = vpop.f32.mrf.mxu0
    %197 = vmatprep.mubr.f32.mxu0 0.0
    %198 = vmatmul.mubr.f32.gmra.mxu0 %v98
    %v199 = vpop.f32.mrf.mxu0
    %v200 = vadd.f32 %v71, %v199
    %v201 = vpop.f32.mrf.mxu0
    %202 = vmatprep.mubr.f32.mxu0 0.0
    %203 = vmatmul.mubr.f32.gmra.mxu0 %v101
    %v204 = vpop.f32.mrf.mxu0
    %v205 = vadd.f32 %v76, %v204
    %v206 = vpop.f32.mrf.mxu0
    %207 = vdwg.mxu0
    %v208 = vmax.f32 %v170, 0.0
    %v209 = vmax.f32 %v175, 0.0
    %v210 = vmax.f32 %v180, 0.0
    %v211 = vmax.f32 %v185, 0.0
    %v212 = vmax.f32 %v190, 0.0
    %v213 = vmax.f32 %v195, 0.0
    %v214 = vmax.f32 %v200, 0.0
    %v215 = vmax.f32 %v205, 0.0
    %v216 = vld [vmem:[%s3] sm:$0xf]
    %v217 = vld [vmem:[%s4] sm:$0xf]
    %219 = vset.pattern.permute.xlu0 0
    %220 = vperm.xlu0 %219, %v217
    %v221 = vpop.permute.xlu0 %220
    %vm223 = vcmask 523264
    %v225 = vsel %vm223, %v216, 0
    %227 = vmatprep.subr.mxu0 0.0
    %228 = vmatpush1.msra.mxu0 0.0
    %229 = vmatprep.subr.mxu0 0.0
    %230 = vmatpush1.msra.mxu0 0.0
    %231 = vmatprep.subr.mxu0 0.0
    %232 = vmatpush1.msra.mxu0 0.0
    %233 = vmatprep.subr.mxu0 0.0
    %234 = vmatpush1.msra.mxu0 0.0
    %235 = vmatprep.subr.mxu0 0.0
    %236 = vmatpush1.msra.mxu0 0.0
    %237 = vmatprep.subr.mxu0 0.0
    %238 = vmatpush1.msra.mxu0 0.0
    %239 = vmatprep.subr.mxu0 0.0
    %240 = vmatpush1.msra.mxu0 0.0
    %241 = vmatprep.subr.mxu0 0.0
    %242 = vmatpush1.msra.mxu0 0.0
    %243 = vmatprep.subr.mxu0 0.0
    %244 = vmatpush1.msra.mxu0 %v215
    %245 = vmatprep.subr.mxu0 0.0
    %246 = vmatpush1.msra.mxu0 %v214
    %247 = vmatprep.subr.mxu0 0.0
    %248 = vmatpush1.msra.mxu0 %v213
    %249 = vmatprep.subr.mxu0 0.0
    %250 = vmatpush1.msra.mxu0 %v212
    %251 = vmatprep.subr.mxu0 0.0
    %252 = vmatpush1.msra.mxu0 %v211
    %253 = vmatprep.subr.mxu0 0.0
    %254 = vmatpush1.msra.mxu0 %v210
    %255 = vmatprep.subr.mxu0 0.0
    %256 = vmatpush1.msra.mxu0 %v209
    %257 = vmatprep.subr.mxu0 0.0
    %258 = vmatpush1.msra.mxu0 %v208
    %259 = vmatprep.subr.mxu0 0.0
    %260 = vmatpush2.msra.mxu0 0.0
    %261 = vmatprep.subr.mxu0 0.0
    %262 = vmatpush2.msra.mxu0 0.0
    %263 = vmatprep.subr.mxu0 0.0
    %264 = vmatpush2.msra.mxu0 0.0
    %265 = vmatprep.subr.mxu0 0.0
    %266 = vmatpush2.msra.mxu0 0.0
    %267 = vmatprep.subr.mxu0 0.0
    %268 = vmatpush2.msra.mxu0 0.0
    %269 = vmatprep.subr.mxu0 0.0
    %270 = vmatpush2.msra.mxu0 0.0
    %271 = vmatprep.subr.mxu0 0.0
    %272 = vmatpush2.msra.mxu0 0.0
    %273 = vmatprep.subr.mxu0 0.0
    %274 = vmatpush2.msra.mxu0 0.0
    %275 = vmatprep.subr.mxu0 0.0
    %276 = vmatpush2.msra.mxu0 0.0
    %277 = vmatprep.subr.mxu0 0.0
    %278 = vmatpush2.msra.mxu0 0.0
    %279 = vmatprep.subr.mxu0 0.0
    %280 = vmatpush2.msra.mxu0 0.0
    %281 = vmatprep.subr.mxu0 0.0
    %282 = vmatpush2.msra.mxu0 0.0
    %283 = vmatprep.subr.mxu0 0.0
    %284 = vmatpush2.msra.mxu0 0.0
    %285 = vmatprep.subr.mxu0 0.0
    %286 = vmatpush2.msra.mxu0 0.0
    %287 = vmatprep.subr.mxu0 0.0
    %288 = vmatpush2.msra.mxu0 0.0
    %289 = vmatprep.subr.mxu0 0.0
    %290 = vmatpush2.msra.mxu0 0.0
    %291 = vmatprep.mubr.f32.mxu0 0.0
    %292 = vmatmul.mubr.f32.gmra.mxu0 %v225
    %v293 = vpop.f32.mrf.mxu0
    %v294 = vadd.f32 %v221, %v293
    %v295 = vpop.f32.mrf.mxu0
    %296 = vdwg.mxu0
    %vm297 = vcmask 1043456
    %v298 = vsel %vm297, %v294, -inf
    %v299 = vrot.slane %v298, 4
    %v300 = vmax.f32 %v298, %v299
    %v301 = vrot.slane %v300, 2
    %v302 = vmax.f32 %v300, %v301
    %v303 = vrot.slane %v302, 1
    %v304 = vmax.f32 %v302, %v303
    %v305 = vsub.f32 %v294, %v304
    %v306 = vmul.f32 %v305, 1.442695
    %v307 = vpow.pop %v306
    %v308 = vsel %vm297, %v307, 0.0
    %v309 = vrot.slane %v308, 4
    %v310 = vadd.f32 %v308, %v309
    %v311 = vrot.slane %v310, 2
    %v312 = vadd.f32 %v310, %v311
    %v313 = vrot.slane %v312, 1
    %v314 = vadd.f32 %v312, %v313
    %v315 = vrcp.pop %v314
    %v316 = vmul.f32 %v307, %v315
    %317 = vst [vmem:[#allocation2] sm:$0xf] %v316
    // Predicated region
    $region22: #{tpu_custom_call.1} parent=1 // pred_check
      _
    $region23: #{tpu_custom_call.1} parent=1 // pred_check_branch
      %319 = sbr.rel (0) target = $region25
    $region24: #{tpu_custom_call.1} parent=1 // pred_region
      %s321 = ssub.s32 64, 64
      %322 = vsyncadd [#allocation3], %s321
      %s324 = sshll.u32 [#allocation2], 4
      %s325 = int_to_ptr.vmem [resolvable:$true] %s324
      %327 = dma.vmem_to_hbm [thread:$0]  %s325, 64, %s5, [#allocation3]
    $region25: #{tpu_custom_call.1} parent=1 // pred_fallthru
      _
    // Predicated region
    $region26: #{tpu_custom_call.1} parent=1 // pred_check
      _
    $region27: #{tpu_custom_call.1} parent=1 // pred_check_branch
      %329 = sbr.rel (0) target = $region29
    $region28: #{tpu_custom_call.1} parent=1 // pred_region
      %330 = dma.done [#allocation3], 64
    $region29: #{tpu_custom_call.1} parent=1 // pred_fallthru
      _
    %331 = vsyncpa [#allocation3], 1

</llo_original>
